<compile_context>
chip_gen: v7x
topology: tpu7x:2x2x1
jax: 0.10.0
libtpu: 0.0.40
codegen_flags: <defaults>
</compile_context>

<pallas_src>
import functools

import jax
import jax.numpy as jnp
from jax.experimental import pallas as pl
from jax.experimental.pallas import tpu as pltpu


def gmu_kernel(a_ref, wbd_ref, batt_ref, exp_ref, whead_ref, bd_ref, out_ref,
               *, compute_dtype):
    # a_ref     : [TB, M*H]   flattened activations (storage dtype, e.g. bf16)
    # wbd_ref   : [M*H, M]    block-diagonal additive-attention weights (compute dtype)
    # batt_ref  : [1, 1]      additive-attention bias (f32)
    # exp_ref   : [M, M*H]    0/1 expansion matrix broadcasting att over H (compute dtype)
    # whead_ref : [M*H, 2]    classifier weight tiled over modalities (compute dtype)
    # bd_ref    : [1, 2]      classifier bias (f32)
    # out_ref   : [TB, 2]     logits (f32)
    cdt = compute_dtype
    A = a_ref[...].astype(cdt)                                            # [TB, MH]

    # --- additive attention scores: block-diagonal matmul on the MXU ------------------
    scores = jnp.dot(A, wbd_ref[...], preferred_element_type=jnp.float32)  # [TB, M]
    scores = scores + batt_ref[0, 0]

    # --- softmax over modalities (f32, numerically stable) ----------------------------
    m_max = jnp.max(scores, axis=-1, keepdims=True)                        # [TB, 1]
    e = jnp.exp(scores - m_max)                                            # [TB, M]
    denom = jnp.sum(e, axis=-1, keepdims=True)                             # [TB, 1]
    att = e * pl.reciprocal(denom, approx=True)                            # [TB, M]

    # --- broadcast att over H on the MXU (one nonzero per column -> exact) ------------
    att_e = jnp.dot(att.astype(cdt), exp_ref[...])                         # [TB, MH]

    # --- tanh-weighted features (EUP + VPU, compute dtype) ----------------------------
    Y = jnp.tanh(A) * att_e                                                # [TB, MH]

    # --- fused modality-fold + Linear(H -> 2) head on the MXU -------------------------
    logits = jnp.dot(Y, whead_ref[...], preferred_element_type=jnp.float32)  # [TB, 2]
    out_ref[...] = logits + bd_ref[...]


def _chip_budget():
    """(vmem_limit_bytes, bf16_vector_ok) with conservative fallbacks."""
    kind = ""
    try:
        kind = jax.devices()[0].device_kind.lower()
    except Exception:
        pass
    is_v7 = ("7x" in kind) or ("v7" in kind)
    bf16_vector_ok = is_v7 or ("v6" in kind)          # v5e and older: no bf16 VPU/EUP
    cap = None
    try:
        cap = int(pltpu.get_tpu_info().vmem_capacity_bytes)
    except Exception:
        cap = None
    if cap is None:
        cap = 64 * 1024 * 1024 if (is_v7 or not kind) else 128 * 1024 * 1024
    # v7x has 64 MiB/TC -> keep the scoped request <= ~44 MiB; v5e/v6e (128 MiB) -> 80 MiB.
    limit = min(cap * 5 // 8, (44 if is_v7 else 80) * 1024 * 1024)
    return int(limit), bf16_vector_ok


@functools.partial(jax.jit,
                   static_argnames=("block_b", "compute_dtype", "vmem_limit_bytes"))
def _gmu_forward_impl(A, w_att, b_att, w_dense, b_dense, *,
                      block_b, compute_dtype, vmem_limit_bytes):
    B, M, H = A.shape
    MH = M * H
    cdt = jnp.dtype(compute_dtype)

    # ---- tiny host-side parameter matrices (resident in VMEM for the whole grid) -----
    w_att_v = w_att.reshape(-1).astype(jnp.float32)                      # [H]
    b_att_s = b_att.reshape(1, 1).astype(jnp.float32)                    # [1, 1]
    w_dense2 = w_dense.reshape(H, 2).astype(jnp.float32)                 # [H, 2]
    b_dense2 = b_dense.reshape(1, 2).astype(jnp.float32)                 # [1, 2]

    eye_m = jnp.eye(M, dtype=jnp.float32)
    w_bd = (eye_m[:, None, :] * w_att_v[None, :, None]).reshape(MH, M).astype(cdt)
    expand = jnp.repeat(eye_m, H, axis=1).astype(cdt)                    # [M, MH]
    w_head = jnp.tile(w_dense2, (M, 1)).astype(cdt)                      # [MH, 2]

    # ---- lane-dense activation layout: free metadata reshape, no extra HBM pass ------
    A_flat = A.reshape(B, MH)
    num_blocks = pl.cdiv(B, block_b)
    B_pad = num_blocks * block_b
    if B_pad != B:
        # Only for large ragged batches; padded rows give bias-only logits, sliced off.
        A_flat = jnp.pad(A_flat, ((0, B_pad - B), (0, 0)))

    out = pl.pallas_call(
        functools.partial(gmu_kernel, compute_dtype=cdt),
        out_shape=jax.ShapeDtypeStruct((B_pad, 2), jnp.float32),
        grid_spec=pltpu.PrefetchScalarGridSpec(
            num_scalar_prefetch=0,
            grid=(num_blocks,),
            in_specs=[
                # Streamed, double-buffered, lane-dense activation tile.
                pl.BlockSpec((block_b, MH), lambda i: (i, 0)),
                # Tiny resident parameters (constant index maps).
                pl.BlockSpec((MH, M), lambda i: (0, 0)),
                pl.BlockSpec((1, 1), lambda i: (0, 0)),
                pl.BlockSpec((M, MH), lambda i: (0, 0)),
                pl.BlockSpec((MH, 2), lambda i: (0, 0)),
                pl.BlockSpec((1, 2), lambda i: (0, 0)),
            ],
            out_specs=pl.BlockSpec((block_b, 2), lambda i: (i, 0)),
        ),
        compiler_params=pltpu.CompilerParams(
            dimension_semantics=("parallel",),      # megacore-shard the batch axis (v7x)
            vmem_limit_bytes=vmem_limit_bytes,
        ),
    )(A_flat, w_bd, b_att_s, expand, w_head, b_dense2)

    return out[:B]


def gmu_forward(A, w_att, b_att, w_dense, b_dense, *, block_b=None, compute_dtype=None):
    """GMU forward.  A: [B, M, H]; w_att: [H, 1]; w_dense: [H, 2]; returns f32 [B, 2]."""
    B, M, H = A.shape
    MH = M * H

    vmem_limit, bf16_ok = _chip_budget()
    if compute_dtype is None:
        compute_dtype = "bfloat16" if bf16_ok else "float32"
    cdt = jnp.dtype(compute_dtype)
    store_bytes = jnp.dtype(A.dtype).itemsize

    if block_b is None:
        # Per-step residents: 2x store-dtype A buffers (double buffer) + ~3 compute-dtype
        # tile-sized temporaries (upcast/tanh/product) + tiny params and output.
        row_bytes = MH * (2 * store_bytes + 3 * cdt.itemsize) + 64
        usable = vmem_limit * 3 // 4
        tb_budget = usable // row_bytes
        tb_dma = (8 * 1024 * 1024) // max(1, MH * store_bytes)   # ~8 MiB / streamed buffer
        tb = max(8, min(tb_budget, tb_dma))
        tb = (tb // 8) * 8
        if B <= tb:
            # Batch fits in one block; split in two for v7x megacore when it is big enough.
            nb = 2 if B >= 2048 else 1
        else:
            nb = pl.cdiv(B, tb)
        block_b = B if nb == 1 else ((pl.cdiv(B, nb) + 7) // 8) * 8

    return _gmu_forward_impl(A, w_att, b_att, w_dense, b_dense,
                             block_b=int(block_b),
                             compute_dtype=str(cdt.name),
                             vmem_limit_bytes=int(vmem_limit))


def gmu_reference(A, w_att, b_att, w_dense, b_dense):
    """Pure-JAX reference mirroring the PyTorch module (f32 math)."""
    Af = A.astype(jnp.float32)
    scores = jnp.einsum("bmh,h->bm", Af, w_att.reshape(-1).astype(jnp.float32))
    scores = scores + b_att.reshape(()).astype(jnp.float32)
    att = jax.nn.softmax(scores, axis=-1)                          # [B, M]
    X = jnp.sum(jnp.tanh(Af) * att[:, :, None], axis=1)            # [B, H]
    return X @ w_dense.reshape(A.shape[-1], 2).astype(jnp.float32) \
        + b_dense.reshape(1, 2).astype(jnp.float32)


if __name__ == "__main__":
    B, M, H = 8, 8, 32  # batch, modalities/seq, hidden_size

    key = jax.random.PRNGKey(0)
    k_a, k_w1, k_b1, k_w2, k_b2 = jax.random.split(key, 5)

    A = jax.random.normal(k_a, (B, M, H), dtype=jnp.float32)

    bound = 1.0 / jnp.sqrt(H)
    w_att = jax.random.uniform(k_w1, (H, 1), jnp.float32, -bound, bound)
    b_att = jax.random.uniform(k_b1, (1,), jnp.float32, -bound, bound)
    w_dense = jax.random.uniform(k_w2, (H, 2), jnp.float32, -bound, bound)
    b_dense = jax.random.uniform(k_b2, (2,), jnp.float32, -bound, bound)

    # Feed bf16 activations end-to-end: no wrapper-side cast pass, halved streaming bytes.
    A_bf16 = A.astype(jnp.bfloat16)

    out = gmu_forward(A_bf16, w_att, b_att, w_dense, b_dense)
    out = jax.block_until_ready(out)
    assert out.shape == (B, 2), out.shape

    # Reference on the same bf16-quantized activations (kernel may also use bf16 tanh/mul
    # on v6e/v7x and the approx EUP reciprocal in the softmax).
    ref_q = gmu_reference(A_bf16.astype(jnp.float32), w_att, b_att, w_dense, b_dense)
    assert jnp.allclose(out, ref_q, atol=2e-2, rtol=2e-2), (out, ref_q)

    # Looser sanity check against the full-f32 reference (covers bf16 storage error).
    ref_f32 = gmu_reference(A, w_att, b_att, w_dense, b_dense)
    assert jnp.allclose(out, ref_f32, atol=5e-2, rtol=5e-2), (out, ref_f32)

    print("KERNEL_OK")
</pallas_src>

<mosaic_0001>
module attributes {stable_mosaic.version = 11 : i64} {
  func.func @gmu_kernel(%arg0: i32, %arg1: memref<8x256xbf16, #tpu.memory_space<vmem>>, %arg2: memref<256x8xf32, #tpu.memory_space<vmem>>, %arg3: memref<1x1xf32, #tpu.memory_space<vmem>>, %arg4: memref<8x256xf32, #tpu.memory_space<vmem>>, %arg5: memref<256x2xf32, #tpu.memory_space<vmem>>, %arg6: memref<1x2xf32, #tpu.memory_space<vmem>>, %arg7: memref<8x2xf32, #tpu.memory_space<vmem>>) attributes {dimension_semantics = [#tpu.dimension_semantics<parallel>], iteration_bounds = array<i64: 1>, scalar_prefetch = 0 : i64, scratch_operands = 0 : i64, tpu.core_type = #tpu.core_type<tc>, window_params = [{transform_indices = @transform_0, window_bounds = array<i64: 8, 256>}, {pipeline_mode = #tpu.pipeline_mode<synchronous>, transform_indices = @transform_1, window_bounds = array<i64: 256, 8>}, {pipeline_mode = #tpu.pipeline_mode<synchronous>, transform_indices = @transform_2, window_bounds = array<i64: 1, 1>}, {pipeline_mode = #tpu.pipeline_mode<synchronous>, transform_indices = @transform_3, window_bounds = array<i64: 8, 256>}, {pipeline_mode = #tpu.pipeline_mode<synchronous>, transform_indices = @transform_4, window_bounds = array<i64: 256, 2>}, {pipeline_mode = #tpu.pipeline_mode<synchronous>, transform_indices = @transform_5, window_bounds = array<i64: 1, 2>}, {transform_indices = @transform_6, window_bounds = array<i64: 8, 2>}]} {
    %c0 = arith.constant 0 : index
    %c0_0 = arith.constant 0 : index
    %0 = vector.load %arg1[%c0, %c0_0] : memref<8x256xbf16, #tpu.memory_space<vmem>>, vector<8x256xbf16>
    %1 = arith.extf %0 : vector<8x256xbf16> to vector<8x256xf32>
    %c0_1 = arith.constant 0 : index
    %c0_2 = arith.constant 0 : index
    %2 = vector.load %arg2[%c0_1, %c0_2] : memref<256x8xf32, #tpu.memory_space<vmem>>, vector<256x8xf32>
    %cst = arith.constant dense<0.000000e+00> : vector<8x8xf32>
    %3 = tpu.matmul %1, %2, %cst {dimension_numbers = #tpu.dot_dimension_numbers<[1], [0], [0], [1], [0, 0, 1, 1], [], []>} : vector<8x256xf32>, vector<256x8xf32>, vector<8x8xf32> -> vector<8x8xf32>
    %c0_3 = arith.constant 0 : index
    %c0_4 = arith.constant 0 : index
    %4 = vector.load %arg3[%c0_3, %c0_4] : memref<1x1xf32, #tpu.memory_space<vmem>>, vector<1x1xf32>
    %5 = vector.extract %4[0, 0] : f32 from vector<1x1xf32>
    %6 = vector.broadcast %5 : f32 to vector<8x8xf32>
    %7 = arith.addf %3, %6 : vector<8x8xf32>
    %cst_5 = arith.constant dense<0xFF800000> : vector<8xf32>
    %8 = vector.multi_reduction <maximumf>, %7, %cst_5 [1] : vector<8x8xf32> to vector<8xf32>
    %9 = vector.shape_cast %8 : vector<8xf32> to vector<8x1xf32>
    %10 = vector.broadcast %9 : vector<8x1xf32> to vector<8x8xf32>
    %11 = arith.subf %7, %10 : vector<8x8xf32>
    %12 = math.exp %11 : vector<8x8xf32>
    %cst_6 = arith.constant dense<0.000000e+00> : vector<8xf32>
    %13 = vector.multi_reduction <add>, %12, %cst_6 [1] : vector<8x8xf32> to vector<8xf32>
    %14 = vector.shape_cast %13 : vector<8xf32> to vector<8x1xf32>
    %15 = tpu.reciprocal %14 {approx = true} : vector<8x1xf32> -> vector<8x1xf32>
    %16 = vector.broadcast %15 : vector<8x1xf32> to vector<8x8xf32>
    %17 = arith.mulf %12, %16 : vector<8x8xf32>
    %c0_7 = arith.constant 0 : index
    %c0_8 = arith.constant 0 : index
    %18 = vector.load %arg4[%c0_7, %c0_8] : memref<8x256xf32, #tpu.memory_space<vmem>>, vector<8x256xf32>
    %cst_9 = arith.constant dense<0.000000e+00> : vector<8x256xf32>
    %19 = tpu.matmul %17, %18, %cst_9 {dimension_numbers = #tpu.dot_dimension_numbers<[1], [0], [0], [1], [0, 0, 1, 1], [], []>} : vector<8x8xf32>, vector<8x256xf32>, vector<8x256xf32> -> vector<8x256xf32>
    %20 = math.tanh %1 : vector<8x256xf32>
    %21 = arith.mulf %20, %19 : vector<8x256xf32>
    %c0_10 = arith.constant 0 : index
    %c0_11 = arith.constant 0 : index
    %22 = vector.load %arg5[%c0_10, %c0_11] : memref<256x2xf32, #tpu.memory_space<vmem>>, vector<256x2xf32>
    %cst_12 = arith.constant dense<0.000000e+00> : vector<8x2xf32>
    %23 = tpu.matmul %21, %22, %cst_12 {dimension_numbers = #tpu.dot_dimension_numbers<[1], [0], [0], [1], [0, 0, 1, 1], [], []>} : vector<8x256xf32>, vector<256x2xf32>, vector<8x2xf32> -> vector<8x2xf32>
    %c0_13 = arith.constant 0 : index
    %c0_14 = arith.constant 0 : index
    %24 = vector.load %arg6[%c0_13, %c0_14] : memref<1x2xf32, #tpu.memory_space<vmem>>, vector<1x2xf32>
    %25 = vector.broadcast %24 : vector<1x2xf32> to vector<8x2xf32>
    %26 = arith.addf %23, %25 : vector<8x2xf32>
    %c0_15 = arith.constant 0 : index
    %c0_16 = arith.constant 0 : index
    %27 = vector.load %arg7[%c0_15, %c0_16] : memref<8x2xf32, #tpu.memory_space<vmem>>, vector<8x2xf32>
    tpu.vector_store %arg7[%c0_15, %c0_16], %26 {strides = array<i32>} : memref<8x2xf32, #tpu.memory_space<vmem>>, vector<8x2xf32>,
    return
  }
  func.func @transform_0(%arg0: i32) -> (i32, i32) {
    %c0_i32 = arith.constant 0 : i32
    %c0_i32_0 = arith.constant 0 : i32
    return %arg0, %c0_i32 : i32, i32
  }
  func.func @transform_1(%arg0: i32) -> (i32, i32) {
    %c0_i32 = arith.constant 0 : i32
    %c0_i32_0 = arith.constant 0 : i32
    %c0_i32_1 = arith.constant 0 : i32
    return %c0_i32, %c0_i32_0 : i32, i32
  }
  func.func @transform_2(%arg0: i32) -> (i32, i32) {
    %c0_i32 = arith.constant 0 : i32
    %c0_i32_0 = arith.constant 0 : i32
    %c0_i32_1 = arith.constant 0 : i32
    return %c0_i32, %c0_i32_0 : i32, i32
  }
  func.func @transform_3(%arg0: i32) -> (i32, i32) {
    %c0_i32 = arith.constant 0 : i32
    %c0_i32_0 = arith.constant 0 : i32
    %c0_i32_1 = arith.constant 0 : i32
    return %c0_i32, %c0_i32_0 : i32, i32
  }
  func.func @transform_4(%arg0: i32) -> (i32, i32) {
    %c0_i32 = arith.constant 0 : i32
    %c0_i32_0 = arith.constant 0 : i32
    %c0_i32_1 = arith.constant 0 : i32
    return %c0_i32, %c0_i32_0 : i32, i32
  }
  func.func @transform_5(%arg0: i32) -> (i32, i32) {
    %c0_i32 = arith.constant 0 : i32
    %c0_i32_0 = arith.constant 0 : i32
    %c0_i32_1 = arith.constant 0 : i32
    return %c0_i32, %c0_i32_0 : i32, i32
  }
  func.func @transform_6(%arg0: i32) -> (i32, i32) {
    %c0_i32 = arith.constant 0 : i32
    %c0_i32_0 = arith.constant 0 : i32
    return %arg0, %c0_i32 : i32, i32
  }
}

</mosaic_0001>

<llo_original>
// kernel: _gmu_forward_impl.1
$region0: #{_gmu_forward_impl.1}
  #allocation0 [shape = 'u32[]', space=smem, size = 0x4, offset = 0x4, fixed_abs, tag = 'smem constant byte address 0x4 - core index']
  #allocation1 [shape = 'u32[144,128]{1,0:T(1,128)}', space=vmem, size = 0x12000, scoped, tag = 'internal scratch']
  #allocation2 [shape = 'f32[1,1]{1,0:T(1,128)S(1)}', space=vmem, size = 0x200, scoped, tag = 'scoped memory for _gmu_forward_impl.1']
  %s0 = inlined_call_operand.hbm [shape: bf16[8,256], index: 0, kind: input, shape index: {}]
  %s1 = inlined_call_operand.hbm [shape: f32[256,8], index: 1, kind: input, shape index: {}]
  %s2 = inlined_call_operand.<no memory space> [shape: f32[1,1], index: 2, kind: input, shape index: {}]
  %s3 = inlined_call_operand.hbm [shape: f32[8,256], index: 3, kind: input, shape index: {}]
  %s4 = inlined_call_operand.hbm [shape: f32[256,2], index: 4, kind: input, shape index: {}]
  %s5 = inlined_call_operand.hbm [shape: f32[1,2], index: 5, kind: input, shape index: {}]
  %s6 = inlined_call_operand.hbm [shape: f32[8,2], index: 6, kind: output, shape index: {}]
  %s7 = sld [smem:[#allocation0]]
  $region54: #{_gmu_forward_impl.1} parent=0
    _
  %s9 = ssub.s32 1, %s7
  %s10 = scalar_select 0, %s9, %s7
  %v11 = vstv %s2
  %12 = vst [vmem:[#allocation2] sm:$0x1] %v11
  $region1: #{_gmu_forward_impl.1} parent=0
    #allocation3 [shape = 'u8[4096]{0}', space=vmem, size = 0x1000, scoped, tag = 'input window, operand 0, single buffered']
    #allocation4 [shape = 's32[1]{0}', space=sflag, size = 0x4, scoped, tag = 'scoped memory for _gmu_forward_impl.1']
    #allocation5 [shape = 's32[1]{0}', space=sflag, size = 0x4, scoped, tag = 'scoped memory for _gmu_forward_impl.1']
    #allocation6 [shape = 'u8[131072]{0}', space=vmem, size = 0x20000, scoped, tag = 'input window, operand 1, single buffered']
    #allocation7 [shape = 's32[1]{0}', space=sflag, size = 0x4, scoped, tag = 'scoped memory for _gmu_forward_impl.1']
    #allocation8 [shape = 'u8[8192]{0}', space=vmem, size = 0x2000, scoped, tag = 'input window, operand 3, single buffered']
    #allocation9 [shape = 'u8[131072]{0}', space=vmem, size = 0x20000, scoped, tag = 'input window, operand 4, single buffered']
    #allocation10 [shape = 's32[1]{0}', space=sflag, size = 0x4, scoped, tag = 'scoped memory for _gmu_forward_impl.1']
    #allocation11 [shape = 'u8[512]{0}', space=vmem, size = 0x400, scoped, tag = 'input window, operand 5, single buffered']
    #allocation12 [shape = 'u8[4096]{0}', space=vmem, size = 0x1000, scoped, tag = 'output window, operand 0, single buffered']
    %13 = vsyncpa [#allocation4], 0
    %14 = vsyncpa [#allocation7], 0
    %15 = vsyncpa [#allocation10], 0
    %16 = vsyncpa [#allocation5], 0
    // Predicated region
    $region2: #{_gmu_forward_impl.1} parent=1 // pred_check
      _
    $region3: #{_gmu_forward_impl.1} parent=1 // pred_check_branch
      %18 = sbr.rel (0) target = $region5
    $region4: #{_gmu_forward_impl.1} parent=1 // pred_region
      %s20 = ssub.s32 128, 128
      %21 = vsyncadd [#allocation4], %s20
      %s23 = sshll.u32 [#allocation3], 4
      %s24 = int_to_ptr.vmem [resolvable:$true] %s23
      %26 = dma.hbm_to_vmem [thread:$0]  %s0, 128, %s24, [#allocation4]
    $region5: #{_gmu_forward_impl.1} parent=1 // pred_fallthru
      _
    // Predicated region
    $region6: #{_gmu_forward_impl.1} parent=1 // pred_check
      _
    $region7: #{_gmu_forward_impl.1} parent=1 // pred_check_branch
      %28 = sbr.rel (0) target = $region9
    $region8: #{_gmu_forward_impl.1} parent=1 // pred_region
      %s30 = ssub.s32 4096, 4096
      %31 = vsyncadd [#allocation7], %s30
      %s32 = sshll.u32 [#allocation6], 4
      %s33 = int_to_ptr.vmem [resolvable:$true] %s32
      %38 = dma.hbm_to_vmem [thread:$0]  %s1, 4096, %s33, [#allocation7], 128, 128, 8
    $region9: #{_gmu_forward_impl.1} parent=1 // pred_fallthru
      _
    // Predicated region
    $region10: #{_gmu_forward_impl.1} parent=1 // pred_check
      _
    $region11: #{_gmu_forward_impl.1} parent=1 // pred_check_branch
      %40 = sbr.rel (0) target = $region13
    $region12: #{_gmu_forward_impl.1} parent=1 // pred_region
      _
    $region13: #{_gmu_forward_impl.1} parent=1 // pred_fallthru
      _
    // Predicated region
    $region14: #{_gmu_forward_impl.1} parent=1 // pred_check
      _
    $region15: #{_gmu_forward_impl.1} parent=1 // pred_check_branch
      %42 = sbr.rel (0) target = $region17
    $region16: #{_gmu_forward_impl.1} parent=1 // pred_region
      %s44 = ssub.s32 256, 256
      %45 = vsyncadd [#allocation7], %s44
      %s47 = sshll.u32 [#allocation8], 4
      %s48 = int_to_ptr.vmem [resolvable:$true] %s47
      %50 = dma.hbm_to_vmem [thread:$0]  %s3, 256, %s48, [#allocation7]
    $region17: #{_gmu_forward_impl.1} parent=1 // pred_fallthru
      _
    // Predicated region
    $region18: #{_gmu_forward_impl.1} parent=1 // pred_check
      _
    $region19: #{_gmu_forward_impl.1} parent=1 // pred_check_branch
      %52 = sbr.rel (0) target = $region21
    $region20: #{_gmu_forward_impl.1} parent=1 // pred_region
      %s54 = ssub.s32 4096, 4096
      %55 = vsyncadd [#allocation10], %s54
      %s56 = sshll.u32 [#allocation9], 4
      %s57 = int_to_ptr.vmem [resolvable:$true] %s56
      %62 = dma.hbm_to_vmem [thread:$0]  %s4, 4096, %s57, [#allocation10], 128, 128, 8
    $region21: #{_gmu_forward_impl.1} parent=1 // pred_fallthru
      _
    // Predicated region
    $region22: #{_gmu_forward_impl.1} parent=1 // pred_check
      _
    $region23: #{_gmu_forward_impl.1} parent=1 // pred_check_branch
      %64 = sbr.rel (0) target = $region25
    $region24: #{_gmu_forward_impl.1} parent=1 // pred_region
      %s66 = ssub.s32 16, 16
      %67 = vsyncadd [#allocation10], %s66
      %s69 = sshll.u32 [#allocation11], 4
      %s70 = int_to_ptr.vmem [resolvable:$true] %s69
      %72 = dma.hbm_to_vmem [thread:$0]  %s5, 16, %s70, [#allocation10]
    $region25: #{_gmu_forward_impl.1} parent=1 // pred_fallthru
      _
    // Predicated region
    $region26: #{_gmu_forward_impl.1} parent=1 // pred_check
      _
    $region27: #{_gmu_forward_impl.1} parent=1 // pred_check_branch
      %74 = sbr.rel (0) target = $region29
    $region28: #{_gmu_forward_impl.1} parent=1 // pred_region
      %75 = dma.done [#allocation4], 128
    $region29: #{_gmu_forward_impl.1} parent=1 // pred_fallthru
      _
    // Predicated region
    $region30: #{_gmu_forward_impl.1} parent=1 // pred_check
      _
    $region31: #{_gmu_forward_impl.1} parent=1 // pred_check_branch
      %77 = sbr.rel (0) target = $region33
    $region32: #{_gmu_forward_impl.1} parent=1 // pred_region
      %78 = dma.done [#allocation7], 4096
    $region33: #{_gmu_forward_impl.1} parent=1 // pred_fallthru
      _
    // Predicated region
    $region34: #{_gmu_forward_impl.1} parent=1 // pred_check
      _
    $region35: #{_gmu_forward_impl.1} parent=1 // pred_check_branch
      %80 = sbr.rel (0) target = $region37
    $region36: #{_gmu_forward_impl.1} parent=1 // pred_region
      %81 = dma.done [#allocation7], 256
    $region37: #{_gmu_forward_impl.1} parent=1 // pred_fallthru
      _
    // Predicated region
    $region38: #{_gmu_forward_impl.1} parent=1 // pred_check
      _
    $region39: #{_gmu_forward_impl.1} parent=1 // pred_check_branch
      %83 = sbr.rel (0) target = $region41
    $region40: #{_gmu_forward_impl.1} parent=1 // pred_region
      %84 = dma.done [#allocation10], 4096
    $region41: #{_gmu_forward_impl.1} parent=1 // pred_fallthru
      _
    // Predicated region
    $region42: #{_gmu_forward_impl.1} parent=1 // pred_check
      _
    $region43: #{_gmu_forward_impl.1} parent=1 // pred_check_branch
      %86 = sbr.rel (0) target = $region45
    $region44: #{_gmu_forward_impl.1} parent=1 // pred_region
      %87 = dma.done [#allocation10], 16
    $region45: #{_gmu_forward_impl.1} parent=1 // pred_fallthru
      _
    %v88 = vld [vmem:[#allocation3] sm:$0xff]
    %v89 = vunpack.c.l.bf16 %v88
    %v90 = vunpack.c.h.bf16 %v88
    %v91 = vld [vmem:[#allocation6] sm:$0xff]
    %v92 = vld [vmem:[#allocation6 + $0x8] sm:$0xff]
    %v93 = vld [vmem:[#allocation6 + $0x10] sm:$0xff]
    %v94 = vld [vmem:[#allocation6 + $0x18] sm:$0xff]
    %v95 = vld [vmem:[#allocation6 + $0x20] sm:$0xff]
    %v96 = vld [vmem:[#allocation6 + $0x28] sm:$0xff]
    %v97 = vld [vmem:[#allocation6 + $0x30] sm:$0xff]
    %v98 = vld [vmem:[#allocation6 + $0x38] sm:$0xff]
    %v99 = vld [vmem:[#allocation6 + $0x40] sm:$0xff]
    %v100 = vld [vmem:[#allocation6 + $0x48] sm:$0xff]
    %v101 = vld [vmem:[#allocation6 + $0x50] sm:$0xff]
    %v102 = vld [vmem:[#allocation6 + $0x58] sm:$0xff]
    %v103 = vld [vmem:[#allocation6 + $0x60] sm:$0xff]
    %v104 = vld [vmem:[#allocation6 + $0x68] sm:$0xff]
    %v105 = vld [vmem:[#allocation6 + $0x70] sm:$0xff]
    %v106 = vld [vmem:[#allocation6 + $0x78] sm:$0xff]
    %v107 = vld [vmem:[#allocation6 + $0x80] sm:$0xff]
    %v108 = vld [vmem:[#allocation6 + $0x88] sm:$0xff]
    %v109 = vld [vmem:[#allocation6 + $0x90] sm:$0xff]
    %v110 = vld [vmem:[#allocation6 + $0x98] sm:$0xff]
    %v111 = vld [vmem:[#allocation6 + $0xa0] sm:$0xff]
    %v112 = vld [vmem:[#allocation6 + $0xa8] sm:$0xff]
    %v113 = vld [vmem:[#allocation6 + $0xb0] sm:$0xff]
    %v114 = vld [vmem:[#allocation6 + $0xb8] sm:$0xff]
    %v115 = vld [vmem:[#allocation6 + $0xc0] sm:$0xff]
    %v116 = vld [vmem:[#allocation6 + $0xc8] sm:$0xff]
    %v117 = vld [vmem:[#allocation6 + $0xd0] sm:$0xff]
    %v118 = vld [vmem:[#allocation6 + $0xd8] sm:$0xff]
    %v119 = vld [vmem:[#allocation6 + $0xe0] sm:$0xff]
    %v120 = vld [vmem:[#allocation6 + $0xe8] sm:$0xff]
    %v121 = vld [vmem:[#allocation6 + $0xf0] sm:$0xff]
    %v122 = vld [vmem:[#allocation6 + $0xf8] sm:$0xff]
    %v123 = vld [vmem:[#allocation2] sm:$0x1]
    %s124 = vtos %v123
    %v125 = vstv %s124
    %126 = vmatprep.subr.mxu0 0.0
    %127 = vmatpush1.msra.mxu0 %v91
    %128 = vmatprep.subr.mxu0 0.0
    %129 = vmatpush1.msra.mxu0 %v92
    %130 = vmatprep.subr.mxu0 0.0
    %131 = vmatpush1.msra.mxu0 %v93
    %132 = vmatprep.subr.mxu0 0.0
    %133 = vmatpush1.msra.mxu0 %v94
    %134 = vmatprep.subr.mxu0 0.0
    %135 = vmatpush1.msra.mxu0 %v95
    %136 = vmatprep.subr.mxu0 0.0
    %137 = vmatpush1.msra.mxu0 %v96
    %138 = vmatprep.subr.mxu0 0.0
    %139 = vmatpush1.msra.mxu0 %v97
    %140 = vmatprep.subr.mxu0 0.0
    %141 = vmatpush1.msra.mxu0 %v98
    %142 = vmatprep.subr.mxu0 0.0
    %143 = vmatpush1.msra.mxu0 %v99
    %144 = vmatprep.subr.mxu0 0.0
    %145 = vmatpush1.msra.mxu0 %v100
    %146 = vmatprep.subr.mxu0 0.0
    %147 = vmatpush1.msra.mxu0 %v101
    %148 = vmatprep.subr.mxu0 0.0
    %149 = vmatpush1.msra.mxu0 %v102
    %150 = vmatprep.subr.mxu0 0.0
    %151 = vmatpush1.msra.mxu0 %v103
    %152 = vmatprep.subr.mxu0 0.0
    %153 = vmatpush1.msra.mxu0 %v104
    %154 = vmatprep.subr.mxu0 0.0
    %155 = vmatpush1.msra.mxu0 %v105
    %156 = vmatprep.subr.mxu0 0.0
    %157 = vmatpush1.msra.mxu0 %v106
    %158 = vmatprep.subr.mxu0 0.0
    %159 = vmatpush1.msra.mxu0 %v107
    %160 = vmatprep.subr.mxu0 0.0
    %161 = vmatpush1.msra.mxu0 %v108
    %162 = vmatprep.subr.mxu0 0.0
    %163 = vmatpush1.msra.mxu0 %v109
    %164 = vmatprep.subr.mxu0 0.0
    %165 = vmatpush1.msra.mxu0 %v110
    %166 = vmatprep.subr.mxu0 0.0
    %167 = vmatpush1.msra.mxu0 %v111
    %168 = vmatprep.subr.mxu0 0.0
    %169 = vmatpush1.msra.mxu0 %v112
    %170 = vmatprep.subr.mxu0 0.0
    %171 = vmatpush1.msra.mxu0 %v113
    %172 = vmatprep.subr.mxu0 0.0
    %173 = vmatpush1.msra.mxu0 %v114
    %174 = vmatprep.subr.mxu0 0.0
    %175 = vmatpush1.msra.mxu0 %v115
    %176 = vmatprep.subr.mxu0 0.0
    %177 = vmatpush1.msra.mxu0 %v116
    %178 = vmatprep.subr.mxu0 0.0
    %179 = vmatpush1.msra.mxu0 %v117
    %180 = vmatprep.subr.mxu0 0.0
    %181 = vmatpush1.msra.mxu0 %v118
    %182 = vmatprep.subr.mxu0 0.0
    %183 = vmatpush1.msra.mxu0 %v119
    %184 = vmatprep.subr.mxu0 0.0
    %185 = vmatpush1.msra.mxu0 %v120
    %186 = vmatprep.subr.mxu0 0.0
    %187 = vmatpush1.msra.mxu0 %v121
    %188 = vmatprep.subr.mxu0 0.0
    %189 = vmatpush1.msra.mxu0 %v122
    %190 = vmatprep.mubr.f32.mxu0 %v90
    %191 = vmatmul.mubr.f32.gmra.mrb[0].mxu0 %v89
    %v192 = vpop.f32.mrb[0].mxu0
    %v193 = vadd.f32 %v125, %v192
    %v194 = vpop.f32.mrb[0].mxu0
    %195 = vdwg.mxu0
    %vm196 = vcmask 64512
    %v197 = vsel %vm196, %v193, -inf
    %198 = vmax.xlane.f32.xlu0 %v197
    %v199 = vpop.xlane.xlu0 %198
    %v200 = vsub.f32 %v193, %v199
    %v201 = vmul.f32 %v200, 1.442695
    %v202 = vpow.pop %v201
    %v203 = vsel %vm196, %v202, 0.0
    %204 = vadd.xlane.f32.xlu0 %v203
    %v205 = vpop.xlane.xlu0 %204
    %v206 = vrcp.pop %v205
    %v207 = vmul.f32 %v202, %v206
    %v208 = vld [vmem:[#allocation8] sm:$0xff]
    %v209 = vld [vmem:[#allocation8 + $0x8] sm:$0xff]
    %v211 = vsel %vm196, %v207, 0
    %213 = vmatprep.subr.mxu0 %v209
    %214 = vmatpush1.msra.mxu0 %v208
    %215 = vmatprep.subr.mxu0 0.0
    %216 = vmatpush1.msra.mxu0 0.0
    %217 = vmatprep.subr.mxu0 0.0
    %218 = vmatpush1.msra.mxu0 0.0
    %219 = vmatprep.subr.mxu0 0.0
    %220 = vmatpush1.msra.mxu0 0.0
    %221 = vmatprep.subr.mxu0 0.0
    %222 = vmatpush1.msra.mxu0 0.0
    %223 = vmatprep.subr.mxu0 0.0
    %224 = vmatpush1.msra.mxu0 0.0
    %225 = vmatprep.subr.mxu0 0.0
    %226 = vmatpush1.msra.mxu0 0.0
    %227 = vmatprep.subr.mxu0 0.0
    %228 = vmatpush1.msra.mxu0 0.0
    %229 = vmatprep.subr.mxu0 0.0
    %230 = vmatpush1.msra.mxu0 0.0
    %231 = vmatprep.subr.mxu0 0.0
    %232 = vmatpush1.msra.mxu0 0.0
    %233 = vmatprep.subr.mxu0 0.0
    %234 = vmatpush1.msra.mxu0 0.0
    %235 = vmatprep.subr.mxu0 0.0
    %236 = vmatpush1.msra.mxu0 0.0
    %237 = vmatprep.subr.mxu0 0.0
    %238 = vmatpush1.msra.mxu0 0.0
    %239 = vmatprep.subr.mxu0 0.0
    %240 = vmatpush1.msra.mxu0 0.0
    %241 = vmatprep.subr.mxu0 0.0
    %242 = vmatpush1.msra.mxu0 0.0
    %243 = vmatprep.subr.mxu0 0.0
    %244 = vmatpush1.msra.mxu0 0.0
    %245 = vmatprep.subr.mxu0 0.0
    %246 = vmatpush1.msra.mxu0 0.0
    %247 = vmatprep.subr.mxu0 0.0
    %248 = vmatpush1.msra.mxu0 0.0
    %249 = vmatprep.subr.mxu0 0.0
    %250 = vmatpush1.msra.mxu0 0.0
    %251 = vmatprep.subr.mxu0 0.0
    %252 = vmatpush1.msra.mxu0 0.0
    %253 = vmatprep.subr.mxu0 0.0
    %254 = vmatpush1.msra.mxu0 0.0
    %255 = vmatprep.subr.mxu0 0.0
    %256 = vmatpush1.msra.mxu0 0.0
    %257 = vmatprep.subr.mxu0 0.0
    %258 = vmatpush1.msra.mxu0 0.0
    %259 = vmatprep.subr.mxu0 0.0
    %260 = vmatpush1.msra.mxu0 0.0
    %261 = vmatprep.subr.mxu0 0.0
    %262 = vmatpush1.msra.mxu0 0.0
    %263 = vmatprep.subr.mxu0 0.0
    %264 = vmatpush1.msra.mxu0 0.0
    %265 = vmatprep.subr.mxu0 0.0
    %266 = vmatpush1.msra.mxu0 0.0
    %267 = vmatprep.subr.mxu0 0.0
    %268 = vmatpush1.msra.mxu0 0.0
    %269 = vmatprep.subr.mxu0 0.0
    %270 = vmatpush1.msra.mxu0 0.0
    %271 = vmatprep.subr.mxu0 0.0
    %272 = vmatpush1.msra.mxu0 0.0
    %273 = vmatprep.subr.mxu0 0.0
    %274 = vmatpush1.msra.mxu0 0.0
    %275 = vmatprep.subr.mxu0 0.0
    %276 = vmatpush1.msra.mxu0 0.0
    %277 = vmatprep.mubr.f32.mxu0 0.0
    %278 = vmatmul.mubr.f32.gmra.mrb[0].mxu0 %v211
    %v279 = vpop.f32.mrb[0].mxu0
    %v280 = vadd.f32 0.0, %v279
    %v281 = vpop.f32.mrb[0].mxu0
    %v282 = vadd.f32 0.0, %v281
    %283 = vdwg.mxu0
    %v284 = vtanh.pop %v89
    %v285 = vtanh.pop %v90
    %v286 = vmul.f32 %v284, %v280
    %v287 = vmul.f32 %v285, %v282
    %v288 = vld [vmem:[#allocation9] sm:$0xff]
    %v289 = vld [vmem:[#allocation9 + $0x8] sm:$0xff]
    %v290 = vld [vmem:[#allocation9 + $0x10] sm:$0xff]
    %v291 = vld [vmem:[#allocation9 + $0x18] sm:$0xff]
    %v292 = vld [vmem:[#allocation9 + $0x20] sm:$0xff]
    %v293 = vld [vmem:[#allocation9 + $0x28] sm:$0xff]
    %v294 = vld [vmem:[#allocation9 + $0x30] sm:$0xff]
    %v295 = vld [vmem:[#allocation9 + $0x38] sm:$0xff]
    %v296 = vld [vmem:[#allocation9 + $0x40] sm:$0xff]
    %v297 = vld [vmem:[#allocation9 + $0x48] sm:$0xff]
    %v298 = vld [vmem:[#allocation9 + $0x50] sm:$0xff]
    %v299 = vld [vmem:[#allocation9 + $0x58] sm:$0xff]
    %v300 = vld [vmem:[#allocation9 + $0x60] sm:$0xff]
    %v301 = vld [vmem:[#allocation9 + $0x68] sm:$0xff]
    %v302 = vld [vmem:[#allocation9 + $0x70] sm:$0xff]
    %v303 = vld [vmem:[#allocation9 + $0x78] sm:$0xff]
    %v304 = vld [vmem:[#allocation9 + $0x80] sm:$0xff]
    %v305 = vld [vmem:[#allocation9 + $0x88] sm:$0xff]
    %v306 = vld [vmem:[#allocation9 + $0x90] sm:$0xff]
    %v307 = vld [vmem:[#allocation9 + $0x98] sm:$0xff]
    %v308 = vld [vmem:[#allocation9 + $0xa0] sm:$0xff]
    %v309 = vld [vmem:[#allocation9 + $0xa8] sm:$0xff]
    %v310 = vld [vmem:[#allocation9 + $0xb0] sm:$0xff]
    %v311 = vld [vmem:[#allocation9 + $0xb8] sm:$0xff]
    %v312 = vld [vmem:[#allocation9 + $0xc0] sm:$0xff]
    %v313 = vld [vmem:[#allocation9 + $0xc8] sm:$0xff]
    %v314 = vld [vmem:[#allocation9 + $0xd0] sm:$0xff]
    %v315 = vld [vmem:[#allocation9 + $0xd8] sm:$0xff]
    %v316 = vld [vmem:[#allocation9 + $0xe0] sm:$0xff]
    %v317 = vld [vmem:[#allocation9 + $0xe8] sm:$0xff]
    %v318 = vld [vmem:[#allocation9 + $0xf0] sm:$0xff]
    %v319 = vld [vmem:[#allocation9 + $0xf8] sm:$0xff]
    %v320 = vld [vmem:[#allocation11] sm:$0x1]
    %v322 = vlaneseq
    %v323 = vshrl.u32 %v322, 7
    %v324 = vsub.s32 0, %v323
    %v325 = vrot.slane %v320, %v324
    %327 = vmatprep.subr.mxu0 0.0
    %328 = vmatpush1.msra.mxu0 %v288
    %329 = vmatprep.subr.mxu0 0.0
    %330 = vmatpush1.msra.mxu0 %v289
    %331 = vmatprep.subr.mxu0 0.0
    %332 = vmatpush1.msra.mxu0 %v290
    %333 = vmatprep.subr.mxu0 0.0
    %334 = vmatpush1.msra.mxu0 %v291
    %335 = vmatprep.subr.mxu0 0.0
    %336 = vmatpush1.msra.mxu0 %v292
    %337 = vmatprep.subr.mxu0 0.0
    %338 = vmatpush1.msra.mxu0 %v293
    %339 = vmatprep.subr.mxu0 0.0
    %340 = vmatpush1.msra.mxu0 %v294
    %341 = vmatprep.subr.mxu0 0.0
    %342 = vmatpush1.msra.mxu0 %v295
    %343 = vmatprep.subr.mxu0 0.0
    %344 = vmatpush1.msra.mxu0 %v296
    %345 = vmatprep.subr.mxu0 0.0
    %346 = vmatpush1.msra.mxu0 %v297
    %347 = vmatprep.subr.mxu0 0.0
    %348 = vmatpush1.msra.mxu0 %v298
    %349 = vmatprep.subr.mxu0 0.0
    %350 = vmatpush1.msra.mxu0 %v299
    %351 = vmatprep.subr.mxu0 0.0
    %352 = vmatpush1.msra.mxu0 %v300
    %353 = vmatprep.subr.mxu0 0.0
    %354 = vmatpush1.msra.mxu0 %v301
    %355 = vmatprep.subr.mxu0 0.0
    %356 = vmatpush1.msra.mxu0 %v302
    %357 = vmatprep.subr.mxu0 0.0
    %358 = vmatpush1.msra.mxu0 %v303
    %359 = vmatprep.subr.mxu0 0.0
    %360 = vmatpush1.msra.mxu0 %v304
    %361 = vmatprep.subr.mxu0 0.0
    %362 = vmatpush1.msra.mxu0 %v305
    %363 = vmatprep.subr.mxu0 0.0
    %364 = vmatpush1.msra.mxu0 %v306
    %365 = vmatprep.subr.mxu0 0.0
    %366 = vmatpush1.msra.mxu0 %v307
    %367 = vmatprep.subr.mxu0 0.0
    %368 = vmatpush1.msra.mxu0 %v308
    %369 = vmatprep.subr.mxu0 0.0
    %370 = vmatpush1.msra.mxu0 %v309
    %371 = vmatprep.subr.mxu0 0.0
    %372 = vmatpush1.msra.mxu0 %v310
    %373 = vmatprep.subr.mxu0 0.0
    %374 = vmatpush1.msra.mxu0 %v311
    %375 = vmatprep.subr.mxu0 0.0
    %376 = vmatpush1.msra.mxu0 %v312
    %377 = vmatprep.subr.mxu0 0.0
    %378 = vmatpush1.msra.mxu0 %v313
    %379 = vmatprep.subr.mxu0 0.0
    %380 = vmatpush1.msra.mxu0 %v314
    %381 = vmatprep.subr.mxu0 0.0
    %382 = vmatpush1.msra.mxu0 %v315
    %383 = vmatprep.subr.mxu0 0.0
    %384 = vmatpush1.msra.mxu0 %v316
    %385 = vmatprep.subr.mxu0 0.0
    %386 = vmatpush1.msra.mxu0 %v317
    %387 = vmatprep.subr.mxu0 0.0
    %388 = vmatpush1.msra.mxu0 %v318
    %389 = vmatprep.subr.mxu0 0.0
    %390 = vmatpush1.msra.mxu0 %v319
    %391 = vmatprep.mubr.f32.mxu0 %v287
    %392 = vmatmul.mubr.f32.gmra.mrb[0].mxu0 %v286
    %v393 = vpop.f32.mrb[0].mxu0
    %v394 = vadd.f32 %v325, %v393
    %v395 = vpop.f32.mrb[0].mxu0
    %396 = vdwg.mxu0
    %vm397 = vcmask 15360
    %398 = vst.msk [vmem:[#allocation12] sm:$0xff] %vm397, %v394
    // Predicated region
    $region46: #{_gmu_forward_impl.1} parent=1 // pred_check
      _
    $region47: #{_gmu_forward_impl.1} parent=1 // pred_check_branch
      %400 = sbr.rel (0) target = $region49
    $region48: #{_gmu_forward_impl.1} parent=1 // pred_region
      %s402 = ssub.s32 128, 128
      %403 = vsyncadd [#allocation5], %s402
      %s405 = sshll.u32 [#allocation12], 4
      %s406 = int_to_ptr.vmem [resolvable:$true] %s405
      %408 = dma.vmem_to_hbm [thread:$0]  %s406, 128, %s6, [#allocation5]
    $region49: #{_gmu_forward_impl.1} parent=1 // pred_fallthru
      _
    // Predicated region
    $region50: #{_gmu_forward_impl.1} parent=1 // pred_check
      _
    $region51: #{_gmu_forward_impl.1} parent=1 // pred_check_branch
      %410 = sbr.rel (0) target = $region53
    $region52: #{_gmu_forward_impl.1} parent=1 // pred_region
      %411 = dma.done [#allocation5], 128
    $region53: #{_gmu_forward_impl.1} parent=1 // pred_fallthru
      _
    %412 = vsyncpa [#allocation4], 1
    %413 = vsyncpa [#allocation7], 1
    %414 = vsyncpa [#allocation10], 1
    %415 = vsyncpa [#allocation5], 1

</llo_original>
